<compile_context>
chip_gen: v5e
topology: v5e:2x2
jax: 0.10.0
libtpu: 0.0.40
codegen_flags: <defaults>
</compile_context>

<pallas_src>
import math

import jax
import jax.numpy as jnp
from jax import lax
from jax.experimental import pallas as pl
from jax.experimental.pallas import tpu as pltpu

# Constants mirrored from the PyTorch file (unit d-ball volume, no scipy needed).
D_CONST = 3
VOLUMN = math.pi ** (D_CONST / 2) / math.gamma(D_CONST / 2 + 1) * 1.0 ** D_CONST
U_OFFSET = 1.0 / (D_CONST * (D_CONST - 2) * VOLUMN)


def make_resnet_tanh4_kernel(compute_dtype, emit_r):
    """Builds the per-tile kernel.

    Layout: activations are [features, tile_n] (features on sublanes, batch on
    lanes); weights stay in PyTorch [out, in] order so every layer is a
    `W @ h + b` MXU matmul; outputs are lane-dense [1, tile_n] stores.
    """
    f32 = jnp.float32
    cdt = compute_dtype

    def kernel(x_ref, w1_ref, b1_ref, w2_ref, b2_ref,
               w3_ref, b3_ref, w4_ref, b4_ref, wout_ref, *out_refs):
        x = x_ref[...]                       # [dim, tn] f32
        dim = x.shape[0]

        def lin(w_ref, b_ref, h_cdt):
            # [out, in] @ [in, tn] -> [out, tn] (f32 accumulate), f32 bias add.
            return (jnp.dot(w_ref[...], h_cdt, preferred_element_type=f32)
                    + b_ref[...])

        def act(h_f32):
            # tanh on the EUP in the compute dtype (bf16 on v6e/v7x).
            return jnp.tanh(h_f32.astype(cdt))

        h = act(lin(w1_ref, b1_ref, x.astype(cdt)))
        h = act(lin(w2_ref, b2_ref, h))
        y2 = h.astype(f32)

        # First residual skip: s = x @ Ix just adds x to the first `dim`
        # feature rows.  Done in-value with a sublane-iota select — no
        # [m, tile_n] scratch slab, no zero-fill, no VMEM round trip.
        row = lax.broadcasted_iota(jnp.int32, y2.shape, 0)
        skip = jnp.where(row == 0, x[0:1, :], f32(0.0))
        for i in range(1, dim):
            skip = skip + jnp.where(row == i, x[i:i + 1, :], f32(0.0))
        y2 = y2 + skip

        h = act(lin(w3_ref, b3_ref, y2.astype(cdt)))
        h = act(lin(w4_ref, b4_ref, h))
        y4 = h.astype(f32) + y2              # second residual skip, f32

        # outlayer (bias=False): [1, m] @ [m, tn] -> [1, tn] lane-dense store.
        y = jnp.dot(wout_ref[...], y4.astype(cdt), preferred_element_type=f32)
        out_refs[0][...] = y

        if emit_r:
            # r = sum_i x_i^2, reused by the net_u / net_v boundary control;
            # x is already VMEM resident so this avoids an extra HBM pass.
            out_refs[1][...] = jnp.sum(x * x, axis=0, keepdims=True)

    return kernel


def _default_use_bf16():
    """bf16 VPU/EUP only pays off on v6e / v7x; keep f32 math on v5e & older."""
    try:
        kind = jax.devices()[0].device_kind.lower()
    except Exception:
        return False
    return not any(tag in kind for tag in ("v2", "v3", "v4", "v5"))


def _choose_batch_tiling(N, tile_n):
    """Large lane tiles; even tile count so the parallel axis splits over 2 TCs."""
    tile_n = max(128, (int(tile_n) // 128) * 128)
    one_tile = pl.cdiv(N, 128) * 128
    two_tile = pl.cdiv(N, 2 * 128) * 128
    if one_tile <= 128:            # tiny batch: a single 128-lane tile
        tile_n = 128
    elif two_tile <= tile_n:       # small batch: exactly two even tiles
        tile_n = two_tile
    n_pad = pl.cdiv(N, tile_n) * tile_n
    n_tiles = n_pad // tile_n
    if n_tiles > 1 and n_tiles % 2 == 1:   # keep the grid even for megacore
        n_pad += tile_n
    return tile_n, n_pad


def resnet_tanh4_forward(x, params, boundary_control_type="none",
                         tile_n=4096, use_bf16=None, transposed=False):
    """Forward pass matching ResNet_Tanh4.forward.

    x: [N, dim] f32, or [dim, N] f32 if transposed=True (preferred: avoids a
    standalone transpose pass over the input).
    """
    if boundary_control_type == "cube":
        # TODO(synk): mirrors the PyTorch forward's implicit `None` for 'cube'.
        return None
    if boundary_control_type not in ("none", "net_u", "net_v"):
        raise ValueError(f"unknown boundary_control_type {boundary_control_type!r}")

    x_t = x if transposed else jnp.transpose(x)          # [dim, N]
    x_t = x_t.astype(jnp.float32)
    dim, N = x_t.shape
    m = params["w1"].shape[0]

    if use_bf16 is None:
        use_bf16 = _default_use_bf16()
    cdt = jnp.bfloat16 if use_bf16 else jnp.float32

    tile_n, n_pad = _choose_batch_tiling(N, tile_n)
    if n_pad != N:
        x_t = jnp.pad(x_t, ((0, 0), (0, n_pad - N)))
    grid = (n_pad // tile_n,)

    # Weights in compute dtype (cast once here); biases stay f32 ([m, 1] so
    # they broadcast across lanes inside the kernel).
    inputs = (
        x_t,
        params["w1"].astype(cdt), params["b1"].astype(jnp.float32),
        params["w2"].astype(cdt), params["b2"].astype(jnp.float32),
        params["w3"].astype(cdt), params["b3"].astype(jnp.float32),
        params["w4"].astype(cdt), params["b4"].astype(jnp.float32),
        params["wout"].astype(cdt),
    )

    # x / outputs are streamed per batch tile; weights & biases are single full
    # blocks with constant index_maps so they are DMA'd once and stay resident.
    x_spec = pl.BlockSpec((dim, tile_n), lambda i: (0, i))
    weight_specs = [pl.BlockSpec(a.shape, lambda i: (0, 0)) for a in inputs[1:]]

    emit_r = boundary_control_type in ("net_u", "net_v")
    out_tile_spec = pl.BlockSpec((1, tile_n), lambda i: (0, i))
    if emit_r:
        out_shape = (jax.ShapeDtypeStruct((1, n_pad), jnp.float32),
                     jax.ShapeDtypeStruct((1, n_pad), jnp.float32))
        out_specs = [out_tile_spec, pl.BlockSpec((1, tile_n), lambda i: (0, i))]
    else:
        out_shape = jax.ShapeDtypeStruct((1, n_pad), jnp.float32)
        out_specs = out_tile_spec

    n_out = 2 if emit_r else 1
    w_bytes = sum(int(a.size) * a.dtype.itemsize for a in inputs[1:])
    flops = int(n_pad) * 2 * m * (dim + 3 * m + 1) + (int(n_pad) * 2 * dim if emit_r else 0)
    transcendentals = int(n_pad) * 4 * m
    bytes_accessed = 4 * int(n_pad) * (dim + n_out) + w_bytes

    kernel = make_resnet_tanh4_kernel(cdt, emit_r)

    res = pl.pallas_call(
        kernel,
        out_shape=out_shape,
        grid_spec=pltpu.PrefetchScalarGridSpec(
            num_scalar_prefetch=0,
            grid=grid,
            in_specs=[x_spec] + weight_specs,
            out_specs=out_specs,
        ),
        compiler_params=pltpu.CompilerParams(
            dimension_semantics=("parallel",)),       # batch split across TCs
        cost_estimate=pl.CostEstimate(
            flops=flops,
            transcendentals=transcendentals,
            bytes_accessed=bytes_accessed),
    )(*inputs)

    if emit_r:
        y, r = res
        y = y[0, :N]
        r = r[0, :N]
        gate = jnp.cos(math.pi / 4 + math.pi / 4 * r)
        if boundary_control_type == "net_u":
            return gate * jnp.exp(y) + jnp.float32(U_OFFSET)
        return gate * y                                # net_v
    return res[0, :N]                                  # none


def init_params(key, dim, m):
    """Deterministic PyTorch-nn.Linear-style init (uniform +-1/sqrt(fan_in)).

    Weights kept in PyTorch storage order [out_features, in_features]; biases
    are [out_features, 1] (lane-broadcast inside the kernel).
    """
    def linear(k, fan_in, fan_out, bias=True):
        kw, kb = jax.random.split(k)
        bound = 1.0 / math.sqrt(fan_in)
        w = jax.random.uniform(kw, (fan_out, fan_in), jnp.float32, -bound, bound)
        b = (jax.random.uniform(kb, (fan_out, 1), jnp.float32, -bound, bound)
             if bias else None)
        return w, b

    keys = jax.random.split(key, 5)
    params = {}
    params["w1"], params["b1"] = linear(keys[0], dim, m)
    params["w2"], params["b2"] = linear(keys[1], m, m)
    params["w3"], params["b3"] = linear(keys[2], m, m)
    params["w4"], params["b4"] = linear(keys[3], m, m)
    params["wout"], _ = linear(keys[4], m, 1, bias=False)
    return params


def reference_forward(x, params, boundary_control_type="none"):
    """Pure-JAX reference of ResNet_Tanh4.forward. x: [N, dim]."""
    N, dim = x.shape
    m = params["w1"].shape[0]
    ix = jnp.zeros((dim, m), jnp.float32)
    ix = ix.at[jnp.arange(dim), jnp.arange(dim)].set(1.0)
    hi = jax.lax.Precision.HIGHEST

    def lin(w, b, h):
        return jnp.dot(h, w.T, precision=hi) + b.T

    s = jnp.dot(x, ix, precision=hi)
    y = jnp.tanh(lin(params["w1"], params["b1"], x))
    y = jnp.tanh(lin(params["w2"], params["b2"], y)) + s
    s = y
    y = jnp.tanh(lin(params["w3"], params["b3"], y))
    y = jnp.tanh(lin(params["w4"], params["b4"], y)) + s
    y = jnp.squeeze(jnp.dot(y, params["wout"].T, precision=hi), axis=1)

    if boundary_control_type == "none":
        return y
    r = jnp.sum(x ** 2, axis=1)
    gate = jnp.cos(math.pi / 4 + math.pi / 4 * r)
    if boundary_control_type == "net_u":
        return gate * jnp.exp(y) + jnp.float32(U_OFFSET)
    if boundary_control_type == "net_v":
        return gate * y
    return None


if __name__ == "__main__":
    key = jax.random.PRNGKey(0)
    k_param, k_x = jax.random.split(key)

    N, dim, m = 1024, 2, 32
    params = init_params(k_param, dim, m)

    # Produce x directly in the kernel's [dim, N] lane-dense layout so the
    # wrapper never needs a standalone transpose pass.
    x_dn = jax.random.normal(k_x, (dim, N), jnp.float32)
    x_nd = jnp.transpose(x_dn)                 # [N, dim] view for the reference

    # 1) f32 path (strict check) across all boundary-control branches.
    for mode in ("none", "net_v", "net_u"):
        out = resnet_tanh4_forward(x_dn, params, boundary_control_type=mode,
                                   use_bf16=False, transposed=True)
        out = jax.block_until_ready(out)
        ref = reference_forward(x_nd, params, mode)
        assert out.shape == (N,), (mode, out.shape)
        assert jnp.allclose(out, ref, atol=2e-4, rtol=2e-4), mode

    # 2) Default fast path: large tiles, bf16 compute on v6e/v7x (f32 on v5e).
    out_fast = resnet_tanh4_forward(x_dn, params, boundary_control_type="none",
                                    transposed=True)
    out_fast = jax.block_until_ready(out_fast)
    ref = reference_forward(x_nd, params, "none")
    assert out_fast.shape == (N,)
    assert jnp.allclose(out_fast, ref, atol=1e-1, rtol=1e-1)

    print("KERNEL_OK")
</pallas_src>

<mosaic_0001>
module attributes {stable_mosaic.version = 11 : i64} {
  func.func @kernel(%arg0: i32, %arg1: memref<2x512xf32, #tpu.memory_space<vmem>>, %arg2: memref<32x2xf32, #tpu.memory_space<vmem>>, %arg3: memref<32x1xf32, #tpu.memory_space<vmem>>, %arg4: memref<32x32xf32, #tpu.memory_space<vmem>>, %arg5: memref<32x1xf32, #tpu.memory_space<vmem>>, %arg6: memref<32x32xf32, #tpu.memory_space<vmem>>, %arg7: memref<32x1xf32, #tpu.memory_space<vmem>>, %arg8: memref<32x32xf32, #tpu.memory_space<vmem>>, %arg9: memref<32x1xf32, #tpu.memory_space<vmem>>, %arg10: memref<1x32xf32, #tpu.memory_space<vmem>>, %arg11: memref<1x512xf32, #tpu.memory_space<vmem>>) attributes {dimension_semantics = [#tpu.dimension_semantics<parallel>], iteration_bounds = array<i64: 2>, scalar_prefetch = 0 : i64, scratch_operands = 0 : i64, tpu.core_type = #tpu.core_type<tc>, window_params = [{transform_indices = @transform_0, window_bounds = array<i64: 2, 512>}, {pipeline_mode = #tpu.pipeline_mode<synchronous>, transform_indices = @transform_1, window_bounds = array<i64: 32, 2>}, {pipeline_mode = #tpu.pipeline_mode<synchronous>, transform_indices = @transform_2, window_bounds = array<i64: 32, 1>}, {pipeline_mode = #tpu.pipeline_mode<synchronous>, transform_indices = @transform_3, window_bounds = array<i64: 32, 32>}, {pipeline_mode = #tpu.pipeline_mode<synchronous>, transform_indices = @transform_4, window_bounds = array<i64: 32, 1>}, {pipeline_mode = #tpu.pipeline_mode<synchronous>, transform_indices = @transform_5, window_bounds = array<i64: 32, 32>}, {pipeline_mode = #tpu.pipeline_mode<synchronous>, transform_indices = @transform_6, window_bounds = array<i64: 32, 1>}, {pipeline_mode = #tpu.pipeline_mode<synchronous>, transform_indices = @transform_7, window_bounds = array<i64: 32, 32>}, {pipeline_mode = #tpu.pipeline_mode<synchronous>, transform_indices = @transform_8, window_bounds = array<i64: 32, 1>}, {pipeline_mode = #tpu.pipeline_mode<synchronous>, transform_indices = @transform_9, window_bounds = array<i64: 1, 32>}, {transform_indices = @transform_10, window_bounds = array<i64: 1, 512>}]} {
    %c0 = arith.constant 0 : index
    %c0_0 = arith.constant 0 : index
    %0 = vector.load %arg1[%c0, %c0_0] : memref<2x512xf32, #tpu.memory_space<vmem>>, vector<2x512xf32>
    %c0_1 = arith.constant 0 : index
    %c0_2 = arith.constant 0 : index
    %1 = vector.load %arg2[%c0_1, %c0_2] : memref<32x2xf32, #tpu.memory_space<vmem>>, vector<32x2xf32>
    %cst = arith.constant dense<0.000000e+00> : vector<32x512xf32>
    %2 = tpu.matmul %1, %0, %cst {dimension_numbers = #tpu.dot_dimension_numbers<[1], [0], [0], [1], [0, 0, 1, 1], [], []>} : vector<32x2xf32>, vector<2x512xf32>, vector<32x512xf32> -> vector<32x512xf32>
    %c0_3 = arith.constant 0 : index
    %c0_4 = arith.constant 0 : index
    %3 = vector.load %arg3[%c0_3, %c0_4] : memref<32x1xf32, #tpu.memory_space<vmem>>, vector<32x1xf32>
    %4 = vector.broadcast %3 : vector<32x1xf32> to vector<32x512xf32>
    %5 = arith.addf %2, %4 : vector<32x512xf32>
    %6 = math.tanh %5 : vector<32x512xf32>
    %c0_5 = arith.constant 0 : index
    %c0_6 = arith.constant 0 : index
    %7 = vector.load %arg4[%c0_5, %c0_6] : memref<32x32xf32, #tpu.memory_space<vmem>>, vector<32x32xf32>
    %cst_7 = arith.constant dense<0.000000e+00> : vector<32x512xf32>
    %8 = tpu.matmul %7, %6, %cst_7 {dimension_numbers = #tpu.dot_dimension_numbers<[1], [0], [0], [1], [0, 0, 1, 1], [], []>} : vector<32x32xf32>, vector<32x512xf32>, vector<32x512xf32> -> vector<32x512xf32>
    %c0_8 = arith.constant 0 : index
    %c0_9 = arith.constant 0 : index
    %9 = vector.load %arg5[%c0_8, %c0_9] : memref<32x1xf32, #tpu.memory_space<vmem>>, vector<32x1xf32>
    %10 = vector.broadcast %9 : vector<32x1xf32> to vector<32x512xf32>
    %11 = arith.addf %8, %10 : vector<32x512xf32>
    %12 = math.tanh %11 : vector<32x512xf32>
    %13 = tpu.iota {dimensions = array<i32: 0>} : vector<32x512xi32>
    %c0_i32 = arith.constant 0 : i32
    %14 = vector.broadcast %c0_i32 : i32 to vector<32x512xi32>
    %15 = arith.cmpi eq, %13, %14 : vector<32x512xi32>
    %16 = vector.extract_strided_slice %0 {offsets = [0, 0], sizes = [1, 512], strides = [1, 1]} : vector<2x512xf32> to vector<1x512xf32>
    %cst_10 = arith.constant 0.000000e+00 : f32
    %17 = vector.shape_cast %16 : vector<1x512xf32> to vector<1x512xf32>
    %18 = vector.broadcast %17 : vector<1x512xf32> to vector<32x512xf32>
    %19 = vector.broadcast %cst_10 : f32 to vector<32x512xf32>
    %20 = arith.select %15, %18, %19 : vector<32x512xi1>, vector<32x512xf32>
    %c1_i32 = arith.constant 1 : i32
    %21 = vector.broadcast %c1_i32 : i32 to vector<32x512xi32>
    %22 = arith.cmpi eq, %13, %21 : vector<32x512xi32>
    %23 = vector.extract_strided_slice %0 {offsets = [1, 0], sizes = [1, 512], strides = [1, 1]} : vector<2x512xf32> to vector<1x512xf32>
    %cst_11 = arith.constant 0.000000e+00 : f32
    %24 = vector.shape_cast %23 : vector<1x512xf32> to vector<1x512xf32>
    %25 = vector.broadcast %24 : vector<1x512xf32> to vector<32x512xf32>
    %26 = vector.broadcast %cst_11 : f32 to vector<32x512xf32>
    %27 = arith.select %22, %25, %26 : vector<32x512xi1>, vector<32x512xf32>
    %28 = arith.addf %20, %27 : vector<32x512xf32>
    %29 = arith.addf %12, %28 : vector<32x512xf32>
    %c0_12 = arith.constant 0 : index
    %c0_13 = arith.constant 0 : index
    %30 = vector.load %arg6[%c0_12, %c0_13] : memref<32x32xf32, #tpu.memory_space<vmem>>, vector<32x32xf32>
    %cst_14 = arith.constant dense<0.000000e+00> : vector<32x512xf32>
    %31 = tpu.matmul %30, %29, %cst_14 {dimension_numbers = #tpu.dot_dimension_numbers<[1], [0], [0], [1], [0, 0, 1, 1], [], []>} : vector<32x32xf32>, vector<32x512xf32>, vector<32x512xf32> -> vector<32x512xf32>
    %c0_15 = arith.constant 0 : index
    %c0_16 = arith.constant 0 : index
    %32 = vector.load %arg7[%c0_15, %c0_16] : memref<32x1xf32, #tpu.memory_space<vmem>>, vector<32x1xf32>
    %33 = vector.broadcast %32 : vector<32x1xf32> to vector<32x512xf32>
    %34 = arith.addf %31, %33 : vector<32x512xf32>
    %35 = math.tanh %34 : vector<32x512xf32>
    %c0_17 = arith.constant 0 : index
    %c0_18 = arith.constant 0 : index
    %36 = vector.load %arg8[%c0_17, %c0_18] : memref<32x32xf32, #tpu.memory_space<vmem>>, vector<32x32xf32>
    %cst_19 = arith.constant dense<0.000000e+00> : vector<32x512xf32>
    %37 = tpu.matmul %36, %35, %cst_19 {dimension_numbers = #tpu.dot_dimension_numbers<[1], [0], [0], [1], [0, 0, 1, 1], [], []>} : vector<32x32xf32>, vector<32x512xf32>, vector<32x512xf32> -> vector<32x512xf32>
    %c0_20 = arith.constant 0 : index
    %c0_21 = arith.constant 0 : index
    %38 = vector.load %arg9[%c0_20, %c0_21] : memref<32x1xf32, #tpu.memory_space<vmem>>, vector<32x1xf32>
    %39 = vector.broadcast %38 : vector<32x1xf32> to vector<32x512xf32>
    %40 = arith.addf %37, %39 : vector<32x512xf32>
    %41 = math.tanh %40 : vector<32x512xf32>
    %42 = arith.addf %41, %29 : vector<32x512xf32>
    %c0_22 = arith.constant 0 : index
    %c0_23 = arith.constant 0 : index
    %43 = vector.load %arg10[%c0_22, %c0_23] : memref<1x32xf32, #tpu.memory_space<vmem>>, vector<1x32xf32>
    %cst_24 = arith.constant dense<0.000000e+00> : vector<1x512xf32>
    %44 = tpu.matmul %43, %42, %cst_24 {dimension_numbers = #tpu.dot_dimension_numbers<[1], [0], [0], [1], [0, 0, 1, 1], [], []>} : vector<1x32xf32>, vector<32x512xf32>, vector<1x512xf32> -> vector<1x512xf32>
    %c0_25 = arith.constant 0 : index
    %c0_26 = arith.constant 0 : index
    %45 = vector.load %arg11[%c0_25, %c0_26] : memref<1x512xf32, #tpu.memory_space<vmem>>, vector<1x512xf32>
    tpu.vector_store %arg11[%c0_25, %c0_26], %44 {strides = array<i32>} : memref<1x512xf32, #tpu.memory_space<vmem>>, vector<1x512xf32>,
    return
  }
  func.func @transform_0(%arg0: i32) -> (i32, i32) {
    %c0_i32 = arith.constant 0 : i32
    %c0_i32_0 = arith.constant 0 : i32
    return %c0_i32, %arg0 : i32, i32
  }
  func.func @transform_1(%arg0: i32) -> (i32, i32) {
    %c0_i32 = arith.constant 0 : i32
    %c0_i32_0 = arith.constant 0 : i32
    %c0_i32_1 = arith.constant 0 : i32
    return %c0_i32, %c0_i32_0 : i32, i32
  }
  func.func @transform_2(%arg0: i32) -> (i32, i32) {
    %c0_i32 = arith.constant 0 : i32
    %c0_i32_0 = arith.constant 0 : i32
    %c0_i32_1 = arith.constant 0 : i32
    return %c0_i32, %c0_i32_0 : i32, i32
  }
  func.func @transform_3(%arg0: i32) -> (i32, i32) {
    %c0_i32 = arith.constant 0 : i32
    %c0_i32_0 = arith.constant 0 : i32
    %c0_i32_1 = arith.constant 0 : i32
    return %c0_i32, %c0_i32_0 : i32, i32
  }
  func.func @transform_4(%arg0: i32) -> (i32, i32) {
    %c0_i32 = arith.constant 0 : i32
    %c0_i32_0 = arith.constant 0 : i32
    %c0_i32_1 = arith.constant 0 : i32
    return %c0_i32, %c0_i32_0 : i32, i32
  }
  func.func @transform_5(%arg0: i32) -> (i32, i32) {
    %c0_i32 = arith.constant 0 : i32
    %c0_i32_0 = arith.constant 0 : i32
    %c0_i32_1 = arith.constant 0 : i32
    return %c0_i32, %c0_i32_0 : i32, i32
  }
  func.func @transform_6(%arg0: i32) -> (i32, i32) {
    %c0_i32 = arith.constant 0 : i32
    %c0_i32_0 = arith.constant 0 : i32
    %c0_i32_1 = arith.constant 0 : i32
    return %c0_i32, %c0_i32_0 : i32, i32
  }
  func.func @transform_7(%arg0: i32) -> (i32, i32) {
    %c0_i32 = arith.constant 0 : i32
    %c0_i32_0 = arith.constant 0 : i32
    %c0_i32_1 = arith.constant 0 : i32
    return %c0_i32, %c0_i32_0 : i32, i32
  }
  func.func @transform_8(%arg0: i32) -> (i32, i32) {
    %c0_i32 = arith.constant 0 : i32
    %c0_i32_0 = arith.constant 0 : i32
    %c0_i32_1 = arith.constant 0 : i32
    return %c0_i32, %c0_i32_0 : i32, i32
  }
  func.func @transform_9(%arg0: i32) -> (i32, i32) {
    %c0_i32 = arith.constant 0 : i32
    %c0_i32_0 = arith.constant 0 : i32
    %c0_i32_1 = arith.constant 0 : i32
    return %c0_i32, %c0_i32_0 : i32, i32
  }
  func.func @transform_10(%arg0: i32) -> (i32, i32) {
    %c0_i32 = arith.constant 0 : i32
    %c0_i32_0 = arith.constant 0 : i32
    return %c0_i32, %arg0 : i32, i32
  }
}

</mosaic_0001>

<llo_original>
// kernel: tpu_custom_call.1
$region0: #{tpu_custom_call.1}
  #allocation0 [shape = 'u32[]', space=smem, size = 0x4, offset = 0x4, fixed_abs, tag = 'smem constant byte address 0x4 - core index']
  #allocation1 [shape = 'u32[72,128]{1,0:T(1,128)}', space=vmem, size = 0x9000, scoped, tag = 'internal scratch']
  %s0 = inlined_call_operand.vmem [shape: f32[2,1024], index: 0, kind: input, shape index: {}]
  %s1 = inlined_call_operand.vmem [shape: f32[32,2], index: 1, kind: input, shape index: {}]
  %s2 = inlined_call_operand.vmem [shape: f32[32,1], index: 2, kind: input, shape index: {}]
  %s3 = inlined_call_operand.vmem [shape: f32[32,32], index: 3, kind: input, shape index: {}]
  %s4 = inlined_call_operand.vmem [shape: f32[32,1], index: 4, kind: input, shape index: {}]
  %s5 = inlined_call_operand.vmem [shape: f32[32,32], index: 5, kind: input, shape index: {}]
  %s6 = inlined_call_operand.vmem [shape: f32[32,1], index: 6, kind: input, shape index: {}]
  %s7 = inlined_call_operand.vmem [shape: f32[32,32], index: 7, kind: input, shape index: {}]
  %s8 = inlined_call_operand.vmem [shape: f32[32,1], index: 8, kind: input, shape index: {}]
  %s9 = inlined_call_operand.vmem [shape: f32[1,32], index: 9, kind: input, shape index: {}]
  %s10 = inlined_call_operand.hbm [shape: f32[1,1024], index: 10, kind: output, shape index: {}]
  %s11 = sld [smem:[#allocation0]]
  $region73: #{tpu_custom_call.1} parent=0
    _
  %s13 = ssub.s32 1, %s11
  %s14 = scalar_select 0, %s13, %s11
  $region1: #{tpu_custom_call.1} parent=0
    #allocation2 [shape = 'u8[4096]{0}', space=vmem, size = 0x1000, scoped, tag = 'output window, operand 0']
    #allocation3 [shape = 's32[2]{0}', space=sflag, size = 0x8, scoped, tag = 'scoped memory for tpu_custom_call.1']
    %15 = vsyncpa [#allocation3], 0
    %s16 = scalar_lea.sflag [#allocation3], 1
    %17 = vsyncpa %s16, 0
    loop: start=0, step=1, limit=4
    $region2: #{tpu_custom_call.1} parent=1 // loop_pre_header
      _
    $region3: #{tpu_custom_call.1} parent=1 // loop_header
      %s19 = sphi 0, %s23
      %p20 = scmp.ge.s32.totalorder %s19, 4
      %s29 = sphi 0, %s31
      %s32 = sphi 0, %s29
      %s33 = sphi 0, %s32
      %s49 = sphi 0, %s33
      %s53 = sphi 0, %s53
      %s55 = sphi 0, %s53
      %s56 = sphi 0, %s55
      %s70 = sphi 0, %s56
      %s74 = sphi 0, %s74
      %s76 = sphi 0, %s74
      %s77 = sphi 0, %s76
      %s91 = sphi 0, %s77
      %s95 = sphi 0, %s95
      %s97 = sphi 0, %s95
      %s98 = sphi 0, %s97
      %s112 = sphi 0, %s98
      %s116 = sphi 0, %s116
      %s118 = sphi 0, %s116
      %s119 = sphi 0, %s118
      %s133 = sphi 0, %s119
      %s137 = sphi 0, %s137
      %s139 = sphi 0, %s137
      %s140 = sphi 0, %s139
      %s154 = sphi 0, %s140
      %s158 = sphi 0, %s158
      %s160 = sphi 0, %s158
      %s161 = sphi 0, %s160
      %s175 = sphi 0, %s161
      %s179 = sphi 0, %s179
      %s181 = sphi 0, %s179
      %s182 = sphi 0, %s181
      %s196 = sphi 0, %s182
      %s200 = sphi 0, %s200
      %s202 = sphi 0, %s200
      %s203 = sphi 0, %s202
      %s217 = sphi 0, %s203
      %s221 = sphi 0, %s221
      %s223 = sphi 0, %s221
      %s224 = sphi 0, %s223
      %s238 = sphi 0, %s224
      %s244 = sphi 0, %s246
      %s247 = sphi 0, %s244
      %s248 = sphi 0, %s247
      %s264 = sphi 0, %s248
    $region4: #{tpu_custom_call.1} parent=1 // loop_header_branch
      %22 = sbr.rel (%p20) target = $region8
    $region5: #{tpu_custom_call.1} parent=1 // loop_body
      %s24 = ssub.s32 %s19, 1
      %s25 = ssub.s32 %s19, 2
      %s26 = sadd.s32 %s19, 1
      %s27 = ssub.s32 %s19, %s26
      %p28 = scmp.eq.s32.totalorder %s27, 0
      %s30 = sadd.s32 %s29, 1
      %s31 = scalar_select %p28, %s29, %s30
      %p34 = pneg %p28
      %p35 = scmp.eq.s32.totalorder %s19, 1
      %p36 = por %p34, %p35
      %p37 = scmp.ne.s32.totalorder %s29, %s32
      %p38 = scmp.eq.s32.totalorder %s19, 0
      %p39 = por %p37, %p38
      %p40 = scmp.ne.s32.totalorder %s29, %s32
      %p41 = scmp.eq.s32.totalorder %s24, 1
      %p42 = por %p40, %p41
      %p43 = scmp.ne.s32.totalorder %s32, %s33
      %p44 = scmp.eq.s32.totalorder %s24, 0
      %p45 = por %p43, %p44
      %p46 = scmp.ne.s32.totalorder %s32, %s33
      %p47 = scmp.eq.s32.totalorder %s25, 1
      %p48 = por %p46, %p47
      %p50 = scmp.ne.s32.totalorder %s33, %s49
      %p51 = scmp.eq.s32.totalorder %s25, 0
      %p52 = por %p50, %p51
      %s54 = sadd.s32 %s53, 1
      %p57 = scmp.eq.s32.totalorder %s19, 1
      %p58 = scmp.ne.s32.totalorder %s53, %s55
      %p59 = scmp.eq.s32.totalorder %s19, 0
      %p60 = por %p58, %p59
      %p61 = scmp.ne.s32.totalorder %s53, %s55
      %p62 = scmp.eq.s32.totalorder %s24, 1
      %p63 = por %p61, %p62
      %p64 = scmp.ne.s32.totalorder %s55, %s56
      %p65 = scmp.eq.s32.totalorder %s24, 0
      %p66 = por %p64, %p65
      %p67 = scmp.ne.s32.totalorder %s55, %s56
      %p68 = scmp.eq.s32.totalorder %s25, 1
      %p69 = por %p67, %p68
      %p71 = scmp.ne.s32.totalorder %s56, %s70
      %p72 = scmp.eq.s32.totalorder %s25, 0
      %p73 = por %p71, %p72
      %s75 = sadd.s32 %s74, 1
      %p78 = scmp.eq.s32.totalorder %s19, 1
      %p79 = scmp.ne.s32.totalorder %s74, %s76
      %p80 = scmp.eq.s32.totalorder %s19, 0
      %p81 = por %p79, %p80
      %p82 = scmp.ne.s32.totalorder %s74, %s76
      %p83 = scmp.eq.s32.totalorder %s24, 1
      %p84 = por %p82, %p83
      %p85 = scmp.ne.s32.totalorder %s76, %s77
      %p86 = scmp.eq.s32.totalorder %s24, 0
      %p87 = por %p85, %p86
      %p88 = scmp.ne.s32.totalorder %s76, %s77
      %p89 = scmp.eq.s32.totalorder %s25, 1
      %p90 = por %p88, %p89
      %p92 = scmp.ne.s32.totalorder %s77, %s91
      %p93 = scmp.eq.s32.totalorder %s25, 0
      %p94 = por %p92, %p93
      %s96 = sadd.s32 %s95, 1
      %p99 = scmp.eq.s32.totalorder %s19, 1
      %p100 = scmp.ne.s32.totalorder %s95, %s97
      %p101 = scmp.eq.s32.totalorder %s19, 0
      %p102 = por %p100, %p101
      %p103 = scmp.ne.s32.totalorder %s95, %s97
      %p104 = scmp.eq.s32.totalorder %s24, 1
      %p105 = por %p103, %p104
      %p106 = scmp.ne.s32.totalorder %s97, %s98
      %p107 = scmp.eq.s32.totalorder %s24, 0
      %p108 = por %p106, %p107
      %p109 = scmp.ne.s32.totalorder %s97, %s98
      %p110 = scmp.eq.s32.totalorder %s25, 1
      %p111 = por %p109, %p110
      %p113 = scmp.ne.s32.totalorder %s98, %s112
      %p114 = scmp.eq.s32.totalorder %s25, 0
      %p115 = por %p113, %p114
      %s117 = sadd.s32 %s116, 1
      %p120 = scmp.eq.s32.totalorder %s19, 1
      %p121 = scmp.ne.s32.totalorder %s116, %s118
      %p122 = scmp.eq.s32.totalorder %s19, 0
      %p123 = por %p121, %p122
      %p124 = scmp.ne.s32.totalorder %s116, %s118
      %p125 = scmp.eq.s32.totalorder %s24, 1
      %p126 = por %p124, %p125
      %p127 = scmp.ne.s32.totalorder %s118, %s119
      %p128 = scmp.eq.s32.totalorder %s24, 0
      %p129 = por %p127, %p128
      %p130 = scmp.ne.s32.totalorder %s118, %s119
      %p131 = scmp.eq.s32.totalorder %s25, 1
      %p132 = por %p130, %p131
      %p134 = scmp.ne.s32.totalorder %s119, %s133
      %p135 = scmp.eq.s32.totalorder %s25, 0
      %p136 = por %p134, %p135
      %s138 = sadd.s32 %s137, 1
      %p141 = scmp.eq.s32.totalorder %s19, 1
      %p142 = scmp.ne.s32.totalorder %s137, %s139
      %p143 = scmp.eq.s32.totalorder %s19, 0
      %p144 = por %p142, %p143
      %p145 = scmp.ne.s32.totalorder %s137, %s139
      %p146 = scmp.eq.s32.totalorder %s24, 1
      %p147 = por %p145, %p146
      %p148 = scmp.ne.s32.totalorder %s139, %s140
      %p149 = scmp.eq.s32.totalorder %s24, 0
      %p150 = por %p148, %p149
      %p151 = scmp.ne.s32.totalorder %s139, %s140
      %p152 = scmp.eq.s32.totalorder %s25, 1
      %p153 = por %p151, %p152
      %p155 = scmp.ne.s32.totalorder %s140, %s154
      %p156 = scmp.eq.s32.totalorder %s25, 0
      %p157 = por %p155, %p156
      %s159 = sadd.s32 %s158, 1
      %p162 = scmp.eq.s32.totalorder %s19, 1
      %p163 = scmp.ne.s32.totalorder %s158, %s160
      %p164 = scmp.eq.s32.totalorder %s19, 0
      %p165 = por %p163, %p164
      %p166 = scmp.ne.s32.totalorder %s158, %s160
      %p167 = scmp.eq.s32.totalorder %s24, 1
      %p168 = por %p166, %p167
      %p169 = scmp.ne.s32.totalorder %s160, %s161
      %p170 = scmp.eq.s32.totalorder %s24, 0
      %p171 = por %p169, %p170
      %p172 = scmp.ne.s32.totalorder %s160, %s161
      %p173 = scmp.eq.s32.totalorder %s25, 1
      %p174 = por %p172, %p173
      %p176 = scmp.ne.s32.totalorder %s161, %s175
      %p177 = scmp.eq.s32.totalorder %s25, 0
      %p178 = por %p176, %p177
      %s180 = sadd.s32 %s179, 1
      %p183 = scmp.eq.s32.totalorder %s19, 1
      %p184 = scmp.ne.s32.totalorder %s179, %s181
      %p185 = scmp.eq.s32.totalorder %s19, 0
      %p186 = por %p184, %p185
      %p187 = scmp.ne.s32.totalorder %s179, %s181
      %p188 = scmp.eq.s32.totalorder %s24, 1
      %p189 = por %p187, %p188
      %p190 = scmp.ne.s32.totalorder %s181, %s182
      %p191 = scmp.eq.s32.totalorder %s24, 0
      %p192 = por %p190, %p191
      %p193 = scmp.ne.s32.totalorder %s181, %s182
      %p194 = scmp.eq.s32.totalorder %s25, 1
      %p195 = por %p193, %p194
      %p197 = scmp.ne.s32.totalorder %s182, %s196
      %p198 = scmp.eq.s32.totalorder %s25, 0
      %p199 = por %p197, %p198
      %s201 = sadd.s32 %s200, 1
      %p204 = scmp.eq.s32.totalorder %s19, 1
      %p205 = scmp.ne.s32.totalorder %s200, %s202
      %p206 = scmp.eq.s32.totalorder %s19, 0
      %p207 = por %p205, %p206
      %p208 = scmp.ne.s32.totalorder %s200, %s202
      %p209 = scmp.eq.s32.totalorder %s24, 1
      %p210 = por %p208, %p209
      %p211 = scmp.ne.s32.totalorder %s202, %s203
      %p212 = scmp.eq.s32.totalorder %s24, 0
      %p213 = por %p211, %p212
      %p214 = scmp.ne.s32.totalorder %s202, %s203
      %p215 = scmp.eq.s32.totalorder %s25, 1
      %p216 = por %p214, %p215
      %p218 = scmp.ne.s32.totalorder %s203, %s217
      %p219 = scmp.eq.s32.totalorder %s25, 0
      %p220 = por %p218, %p219
      %s222 = sadd.s32 %s221, 1
      %p225 = scmp.eq.s32.totalorder %s19, 1
      %p226 = scmp.ne.s32.totalorder %s221, %s223
      %p227 = scmp.eq.s32.totalorder %s19, 0
      %p228 = por %p226, %p227
      %p229 = scmp.ne.s32.totalorder %s221, %s223
      %p230 = scmp.eq.s32.totalorder %s24, 1
      %p231 = por %p229, %p230
      %p232 = scmp.ne.s32.totalorder %s223, %s224
      %p233 = scmp.eq.s32.totalorder %s24, 0
      %p234 = por %p232, %p233
      %p235 = scmp.ne.s32.totalorder %s223, %s224
      %p236 = scmp.eq.s32.totalorder %s25, 1
      %p237 = por %p235, %p236
      %p239 = scmp.ne.s32.totalorder %s224, %s238
      %p240 = scmp.eq.s32.totalorder %s25, 0
      %p241 = por %p239, %p240
      %s242 = ssub.s32 %s19, %s26
      %p243 = scmp.eq.s32.totalorder %s242, 0
      %s245 = sadd.s32 %s244, 1
      %s246 = scalar_select %p243, %s244, %s245
      %p249 = pneg %p243
      %p250 = scmp.eq.s32.totalorder %s19, 1
      %p251 = por %p249, %p250
      %p252 = scmp.ne.s32.totalorder %s244, %s247
      %p253 = scmp.eq.s32.totalorder %s19, 0
      %p254 = por %p252, %p253
      %p255 = scmp.ne.s32.totalorder %s244, %s247
      %p256 = scmp.eq.s32.totalorder %s24, 1
      %p257 = por %p255, %p256
      %p258 = scmp.ne.s32.totalorder %s247, %s248
      %p259 = scmp.eq.s32.totalorder %s24, 0
      %p260 = por %p258, %p259
      %p261 = scmp.ne.s32.totalorder %s247, %s248
      %p262 = scmp.eq.s32.totalorder %s25, 1
      %p263 = por %p261, %p262
      %p265 = scmp.ne.s32.totalorder %s248, %s264
      %p266 = scmp.eq.s32.totalorder %s25, 0
      %p267 = por %p265, %p266
      %p268 = scmp.le.s32.totalorder 1, %s19
      %p269 = scmp.lt.s32.totalorder %s19, 3
      %p270 = pnand %p268, %p269
      %p271 = pneg %p270
      // Predicated region
      $region9: #{tpu_custom_call.1} parent=5 // pred_check
        _
      $region10: #{tpu_custom_call.1} parent=5 // pred_check_branch
        %273 = sbr.rel (%p270) target = $region12
      $region11: #{tpu_custom_call.1} parent=5 // pred_region
        %s274 = ssub.s32 %s19, 1
        // Predicated region
        $region13: #{tpu_custom_call.1} parent=11 // pred_check
          %p275 = pneg %p66
        $region14: #{tpu_custom_call.1} parent=11 // pred_check_branch
          %277 = sbr.rel (%p275) target = $region16
        $region15: #{tpu_custom_call.1} parent=11 // pred_region
          _
        $region16: #{tpu_custom_call.1} parent=11 // pred_fallthru
          _
        // Predicated region
        $region17: #{tpu_custom_call.1} parent=11 // pred_check
          %p278 = pneg %p87
        $region18: #{tpu_custom_call.1} parent=11 // pred_check_branch
          %280 = sbr.rel (%p278) target = $region20
        $region19: #{tpu_custom_call.1} parent=11 // pred_region
          _
        $region20: #{tpu_custom_call.1} parent=11 // pred_fallthru
          _
        // Predicated region
        $region21: #{tpu_custom_call.1} parent=11 // pred_check
          %p281 = pneg %p108
        $region22: #{tpu_custom_call.1} parent=11 // pred_check_branch
          %283 = sbr.rel (%p281) target = $region24
        $region23: #{tpu_custom_call.1} parent=11 // pred_region
          _
        $region24: #{tpu_custom_call.1} parent=11 // pred_fallthru
          _
        // Predicated region
        $region25: #{tpu_custom_call.1} parent=11 // pred_check
          %p284 = pneg %p129
        $region26: #{tpu_custom_call.1} parent=11 // pred_check_branch
          %286 = sbr.rel (%p284) target = $region28
        $region27: #{tpu_custom_call.1} parent=11 // pred_region
          _
        $region28: #{tpu_custom_call.1} parent=11 // pred_fallthru
          _
        // Predicated region
        $region29: #{tpu_custom_call.1} parent=11 // pred_check
          %p287 = pneg %p150
        $region30: #{tpu_custom_call.1} parent=11 // pred_check_branch
          %289 = sbr.rel (%p287) target = $region32
        $region31: #{tpu_custom_call.1} parent=11 // pred_region
          _
        $region32: #{tpu_custom_call.1} parent=11 // pred_fallthru
          _
        // Predicated region
        $region33: #{tpu_custom_call.1} parent=11 // pred_check
          %p290 = pneg %p171
        $region34: #{tpu_custom_call.1} parent=11 // pred_check_branch
          %292 = sbr.rel (%p290) target = $region36
        $region35: #{tpu_custom_call.1} parent=11 // pred_region
          _
        $region36: #{tpu_custom_call.1} parent=11 // pred_fallthru
          _
        // Predicated region
        $region37: #{tpu_custom_call.1} parent=11 // pred_check
          %p293 = pneg %p192
        $region38: #{tpu_custom_call.1} parent=11 // pred_check_branch
          %295 = sbr.rel (%p293) target = $region40
        $region39: #{tpu_custom_call.1} parent=11 // pred_region
          _
        $region40: #{tpu_custom_call.1} parent=11 // pred_fallthru
          _
        // Predicated region
        $region41: #{tpu_custom_call.1} parent=11 // pred_check
          %p296 = pneg %p213
        $region42: #{tpu_custom_call.1} parent=11 // pred_check_branch
          %298 = sbr.rel (%p296) target = $region44
        $region43: #{tpu_custom_call.1} parent=11 // pred_region
          _
        $region44: #{tpu_custom_call.1} parent=11 // pred_fallthru
          _
        // Predicated region
        $region45: #{tpu_custom_call.1} parent=11 // pred_check
          %p299 = pneg %p234
        $region46: #{tpu_custom_call.1} parent=11 // pred_check_branch
          %301 = sbr.rel (%p299) target = $region48
        $region47: #{tpu_custom_call.1} parent=11 // pred_region
          _
        $region48: #{tpu_custom_call.1} parent=11 // pred_fallthru
          _
      $region12: #{tpu_custom_call.1} parent=5 // pred_fallthru
        _
      %p302 = scmp.lt.s32.totalorder %s19, 2
      // Predicated region
      $region49: #{tpu_custom_call.1} parent=5 // pred_check
        %p303 = pneg %p302
      $region50: #{tpu_custom_call.1} parent=5 // pred_check_branch
        %305 = sbr.rel (%p303) target = $region52
      $region51: #{tpu_custom_call.1} parent=5 // pred_region
        // Predicated region
        $region53: #{tpu_custom_call.1} parent=51 // pred_check
          %p306 = pneg %p39
        $region54: #{tpu_custom_call.1} parent=51 // pred_check_branch
          %308 = sbr.rel (%p306) target = $region56
        $region55: #{tpu_custom_call.1} parent=51 // pred_region
          %s309 = smul.u32 4, %s19
          %p310 = scmp.lt.s32.totalorder %s309, 7
          %s311 = scalar_select %p310, %s309, 7
          %s312 = smul.addr %s311, 2
          %s313 = scalar_lea.vmem %s0, %s312
          %s314 = smul.u32 4, %s19
        $region56: #{tpu_custom_call.1} parent=51 // pred_fallthru
          _
      $region52: #{tpu_custom_call.1} parent=5 // pred_fallthru
        _
      %p315 = scmp.le.s32.totalorder 1, %s19
      %p316 = scmp.lt.s32.totalorder %s19, 3
      %p317 = pnand %p315, %p316
      %p318 = pneg %p317
      // Predicated region
      $region57: #{tpu_custom_call.1} parent=5 // pred_check
        _
      $region58: #{tpu_custom_call.1} parent=5 // pred_check_branch
        %320 = sbr.rel (%p317) target = $region60
      $region59: #{tpu_custom_call.1} parent=5 // pred_region
        %s321 = ssub.s32 %s19, 1
        %s322 = smul.u32 4, %s24
        %p323 = scmp.lt.s32.totalorder %s322, 7
        %s324 = scalar_select %p323, %s322, 7
        %s325 = smul.addr %s324, 2
        %s326 = scalar_lea.vmem %s0, %s325
        %p327 = pneg %p45
        %p328 = pneg %p42
        %p329 = pneg %p66
        %p330 = pneg %p63
        %p331 = pneg %p87
        %p332 = pneg %p84
        %p333 = pneg %p108
        %p334 = pneg %p105
        %p335 = pneg %p129
        %p336 = pneg %p126
        %p337 = pneg %p150
        %p338 = pneg %p147
        %p339 = pneg %p171
        %p340 = pneg %p168
        %p341 = pneg %p192
        %p342 = pneg %p189
        %p343 = pneg %p213
        %p344 = pneg %p210
        %p345 = pneg %p234
        %p346 = pneg %p231
        %p347 = pneg %p260
        %p348 = pneg %p257
        %s349 = sand.u32 %s247, 1
        %s350 = scalar_lea.sflag [#allocation3], %s349
        %s351 = sand.u32 %s247, 1
        %s352 = smul.addr %s351, 4
        %s353 = scalar_lea.vmem [#allocation2], %s352
        %s354 = smul.u32 4, %s24
        %p355 = scmp.lt.s32.totalorder %s354, 7
        %s356 = scalar_select %p355, %s354, 7
        %s357 = smul.addr %s356, 2
        %s358 = scalar_lea.vmem %s0, %s357
        %s359 = smul.u32 4, %s24
        %s360 = smul.u32 4, %s24
        %v361 = vld [vmem:[%s358] sm:$0xff]
        %v362 = vld [vmem:[%s1] sm:$0xff]
        %v363 = vld [vmem:[%s1 + $0x8] sm:$0xff]
        %v364 = vld [vmem:[%s1 + $0x10] sm:$0xff]
        %v365 = vld [vmem:[%s1 + $0x18] sm:$0xff]
        %v366 = vld [vmem:[%s2] sm:$0xff]
        %v367 = vld [vmem:[%s2 + $0x8] sm:$0xff]
        %v368 = vld [vmem:[%s2 + $0x10] sm:$0xff]
        %v369 = vld [vmem:[%s2 + $0x18] sm:$0xff]
        %371 = vset.pattern.permute.xlu0 0
        %372 = vperm.xlu0 %371, %v366
        %v373 = vpop.permute.xlu0 %372
        %376 = vset.pattern.permute.xlu0 0
        %377 = vperm.xlu0 %376, %v367
        %v378 = vpop.permute.xlu0 %377
        %381 = vset.pattern.permute.xlu0 0
        %382 = vperm.xlu0 %381, %v368
        %v383 = vpop.permute.xlu0 %382
        %386 = vset.pattern.permute.xlu0 0
        %387 = vperm.xlu0 %386, %v369
        %v388 = vpop.permute.xlu0 %387
        %391 = vst [vmem:[#allocation1] ss:$4 sm:$0xff] %v361
        %v392 = vld.sshfl [vmem:[#allocation1] sm:$0xff pattern:$0x73625140]
        %v393 = vld.sshfl [vmem:[#allocation1 + $0x8] sm:$0xff pattern:$0x73625140]
        %v394 = vld.sshfl [vmem:[#allocation1 + $0x10] sm:$0xff pattern:$0x73625140]
        %v395 = vld.sshfl [vmem:[#allocation1 + $0x18] sm:$0xff pattern:$0x73625140]
        %vm396 = vcmask 15360
        %v398 = vsel %vm396, %v362, 0
        %v401 = vsel %vm396, %v363, 0
        %v404 = vsel %vm396, %v364, 0
        %v407 = vsel %vm396, %v365, 0
        %vm409 = vcmask 1041408
        %v410 = vsel %vm409, %v392, 0
        %v412 = vsel %vm409, %v393, 0
        %v414 = vsel %vm409, %v394, 0
        %v416 = vsel %vm409, %v395, 0
        %418 = vmatpush.msra.mxu0 0.0
        %419 = vmatpush.msra.mxu0 0.0
        %420 = vmatpush.msra.mxu0 0.0
        %421 = vmatpush.msra.mxu0 0.0
        %422 = vmatpush.msra.mxu0 0.0
        %423 = vmatpush.msra.mxu0 0.0
        %424 = vmatpush.msra.mxu0 0.0
        %425 = vmatpush.msra.mxu0 0.0
        %426 = vmatpush.msra.mxu0 0.0
        %427 = vmatpush.msra.mxu0 0.0
        %428 = vmatpush.msra.mxu0 0.0
        %429 = vmatpush.msra.mxu0 0.0
        %430 = vmatpush.msra.mxu0 0.0
        %431 = vmatpush.msra.mxu0 0.0
        %432 = vmatpush.msra.mxu0 0.0
        %433 = vmatpush.msra.mxu0 %v410
        %434 = vmatmul.f32.gmra.mxu0 %v398
        %v435 = vpop.f32.mrf.mxu0
        %v436 = vadd.f32 %v373, %v435
        %437 = vmatmul.f32.gmra.mxu0 %v401
        %v438 = vpop.f32.mrf.mxu0
        %v439 = vadd.f32 %v378, %v438
        %440 = vmatmul.f32.gmra.mxu0 %v404
        %v441 = vpop.f32.mrf.mxu0
        %v442 = vadd.f32 %v383, %v441
        %443 = vmatmul.f32.gmra.mxu0 %v407
        %v444 = vpop.f32.mrf.mxu0
        %v445 = vadd.f32 %v388, %v444
        %446 = vdwg.mxu0
        %447 = vmatpush.msra.mxu0 0.0
        %448 = vmatpush.msra.mxu0 0.0
        %449 = vmatpush.msra.mxu0 0.0
        %450 = vmatpush.msra.mxu0 0.0
        %451 = vmatpush.msra.mxu0 0.0
        %452 = vmatpush.msra.mxu0 0.0
        %453 = vmatpush.msra.mxu0 0.0
        %454 = vmatpush.msra.mxu0 0.0
        %455 = vmatpush.msra.mxu0 0.0
        %456 = vmatpush.msra.mxu0 0.0
        %457 = vmatpush.msra.mxu0 0.0
        %458 = vmatpush.msra.mxu0 0.0
        %459 = vmatpush.msra.mxu0 0.0
        %460 = vmatpush.msra.mxu0 0.0
        %461 = vmatpush.msra.mxu0 0.0
        %462 = vmatpush.msra.mxu0 %v412
        %463 = vmatmul.f32.gmra.mxu0 %v398
        %v464 = vpop.f32.mrf.mxu0
        %v465 = vadd.f32 %v373, %v464
        %466 = vmatmul.f32.gmra.mxu0 %v401
        %v467 = vpop.f32.mrf.mxu0
        %v468 = vadd.f32 %v378, %v467
        %469 = vmatmul.f32.gmra.mxu0 %v404
        %v470 = vpop.f32.mrf.mxu0
        %v471 = vadd.f32 %v383, %v470
        %472 = vmatmul.f32.gmra.mxu0 %v407
        %v473 = vpop.f32.mrf.mxu0
        %v474 = vadd.f32 %v388, %v473
        %475 = vdwg.mxu0
        %476 = vmatpush.msra.mxu0 0.0
        %477 = vmatpush.msra.mxu0 0.0
        %478 = vmatpush.msra.mxu0 0.0
        %479 = vmatpush.msra.mxu0 0.0
        %480 = vmatpush.msra.mxu0 0.0
        %481 = vmatpush.msra.mxu0 0.0
        %482 = vmatpush.msra.mxu0 0.0
        %483 = vmatpush.msra.mxu0 0.0
        %484 = vmatpush.msra.mxu0 0.0
        %485 = vmatpush.msra.mxu0 0.0
        %486 = vmatpush.msra.mxu0 0.0
        %487 = vmatpush.msra.mxu0 0.0
        %488 = vmatpush.msra.mxu0 0.0
        %489 = vmatpush.msra.mxu0 0.0
        %490 = vmatpush.msra.mxu0 0.0
        %491 = vmatpush.msra.mxu0 %v414
        %492 = vmatmul.f32.gmra.mxu0 %v398
        %v493 = vpop.f32.mrf.mxu0
        %v494 = vadd.f32 %v373, %v493
        %495 = vmatmul.f32.gmra.mxu0 %v401
        %v496 = vpop.f32.mrf.mxu0
        %v497 = vadd.f32 %v378, %v496
        %498 = vmatmul.f32.gmra.mxu0 %v404
        %v499 = vpop.f32.mrf.mxu0
        %v500 = vadd.f32 %v383, %v499
        %501 = vmatmul.f32.gmra.mxu0 %v407
        %v502 = vpop.f32.mrf.mxu0
        %v503 = vadd.f32 %v388, %v502
        %504 = vdwg.mxu0
        %505 = vmatpush.msra.mxu0 0.0
        %506 = vmatpush.msra.mxu0 0.0
        %507 = vmatpush.msra.mxu0 0.0
        %508 = vmatpush.msra.mxu0 0.0
        %509 = vmatpush.msra.mxu0 0.0
        %510 = vmatpush.msra.mxu0 0.0
        %511 = vmatpush.msra.mxu0 0.0
        %512 = vmatpush.msra.mxu0 0.0
        %513 = vmatpush.msra.mxu0 0.0
        %514 = vmatpush.msra.mxu0 0.0
        %515 = vmatpush.msra.mxu0 0.0
        %516 = vmatpush.msra.mxu0 0.0
        %517 = vmatpush.msra.mxu0 0.0
        %518 = vmatpush.msra.mxu0 0.0
        %519 = vmatpush.msra.mxu0 0.0
        %520 = vmatpush.msra.mxu0 %v416
        %521 = vmatmul.f32.gmra.mxu0 %v398
        %v522 = vpop.f32.mrf.mxu0
        %v523 = vadd.f32 %v373, %v522
        %524 = vmatmul.f32.gmra.mxu0 %v401
        %v525 = vpop.f32.mrf.mxu0
        %v526 = vadd.f32 %v378, %v525
        %527 = vmatmul.f32.gmra.mxu0 %v404
        %v528 = vpop.f32.mrf.mxu0
        %v529 = vadd.f32 %v383, %v528
        %530 = vmatmul.f32.gmra.mxu0 %v407
        %v531 = vpop.f32.mrf.mxu0
        %v532 = vadd.f32 %v388, %v531
        %533 = vdwg.mxu0
        %v534 = vtanh.pop %v436
        %v535 = vtanh.pop %v465
        %v536 = vtanh.pop %v494
        %v537 = vtanh.pop %v523
        %v538 = vtanh.pop %v439
        %v539 = vtanh.pop %v468
        %v540 = vtanh.pop %v497
        %v541 = vtanh.pop %v526
        %v542 = vtanh.pop %v442
        %v543 = vtanh.pop %v471
        %v544 = vtanh.pop %v500
        %v545 = vtanh.pop %v529
        %v546 = vtanh.pop %v445
        %v547 = vtanh.pop %v474
        %v548 = vtanh.pop %v503
        %v549 = vtanh.pop %v532
        %v550 = vld [vmem:[%s3] sm:$0xff]
        %v551 = vld [vmem:[%s3 + $0x8] sm:$0xff]
        %v552 = vld [vmem:[%s3 + $0x10] sm:$0xff]
        %v553 = vld [vmem:[%s3 + $0x18] sm:$0xff]
        %v554 = vld [vmem:[%s4] sm:$0xff]
        %v555 = vld [vmem:[%s4 + $0x8] sm:$0xff]
        %v556 = vld [vmem:[%s4 + $0x10] sm:$0xff]
        %v557 = vld [vmem:[%s4 + $0x18] sm:$0xff]
        %559 = vset.pattern.permute.xlu0 0
        %560 = vperm.xlu0 %559, %v554
        %v561 = vpop.permute.xlu0 %560
        %564 = vset.pattern.permute.xlu0 0
        %565 = vperm.xlu0 %564, %v555
        %v566 = vpop.permute.xlu0 %565
        %569 = vset.pattern.permute.xlu0 0
        %570 = vperm.xlu0 %569, %v556
        %v571 = vpop.permute.xlu0 %570
        %574 = vset.pattern.permute.xlu0 0
        %575 = vperm.xlu0 %574, %v557
        %v576 = vpop.permute.xlu0 %575
        %vm578 = vcmask 261120
        %v580 = vsel %vm578, %v550, 0
        %v583 = vsel %vm578, %v551, 0
        %v586 = vsel %vm578, %v552, 0
        %v589 = vsel %vm578, %v553, 0
        %591 = vmatpush.msra.mxu0 0.0
        %592 = vmatpush.msra.mxu0 0.0
        %593 = vmatpush.msra.mxu0 0.0
        %594 = vmatpush.msra.mxu0 0.0
        %595 = vmatpush.msra.mxu0 0.0
        %596 = vmatpush.msra.mxu0 0.0
        %597 = vmatpush.msra.mxu0 0.0
        %598 = vmatpush.msra.mxu0 0.0
        %599 = vmatpush.msra.mxu0 0.0
        %600 = vmatpush.msra.mxu0 0.0
        %601 = vmatpush.msra.mxu0 0.0
        %602 = vmatpush.msra.mxu0 0.0
        %603 = vmatpush.msra.mxu0 %v546
        %604 = vmatpush.msra.mxu0 %v542
        %605 = vmatpush.msra.mxu0 %v538
        %606 = vmatpush.msra.mxu0 %v534
        %607 = vmatmul.f32.gmra.mxu0 %v580
        %v608 = vpop.f32.mrf.mxu0
        %v609 = vadd.f32 %v561, %v608
        %610 = vmatmul.f32.gmra.mxu0 %v583
        %v611 = vpop.f32.mrf.mxu0
        %v612 = vadd.f32 %v566, %v611
        %613 = vmatmul.f32.gmra.mxu0 %v586
        %v614 = vpop.f32.mrf.mxu0
        %v615 = vadd.f32 %v571, %v614
        %616 = vmatmul.f32.gmra.mxu0 %v589
        %v617 = vpop.f32.mrf.mxu0
        %v618 = vadd.f32 %v576, %v617
        %619 = vdwg.mxu0
        %620 = vmatpush.msra.mxu0 0.0
        %621 = vmatpush.msra.mxu0 0.0
        %622 = vmatpush.msra.mxu0 0.0
        %623 = vmatpush.msra.mxu0 0.0
        %624 = vmatpush.msra.mxu0 0.0
        %625 = vmatpush.msra.mxu0 0.0
        %626 = vmatpush.msra.mxu0 0.0
        %627 = vmatpush.msra.mxu0 0.0
        %628 = vmatpush.msra.mxu0 0.0
        %629 = vmatpush.msra.mxu0 0.0
        %630 = vmatpush.msra.mxu0 0.0
        %631 = vmatpush.msra.mxu0 0.0
        %632 = vmatpush.msra.mxu0 %v547
        %633 = vmatpush.msra.mxu0 %v543
        %634 = vmatpush.msra.mxu0 %v539
        %635 = vmatpush.msra.mxu0 %v535
        %636 = vmatmul.f32.gmra.mxu0 %v580
        %v637 = vpop.f32.mrf.mxu0
        %v638 = vadd.f32 %v561, %v637
        %639 = vmatmul.f32.gmra.mxu0 %v583
        %v640 = vpop.f32.mrf.mxu0
        %v641 = vadd.f32 %v566, %v640
        %642 = vmatmul.f32.gmra.mxu0 %v586
        %v643 = vpop.f32.mrf.mxu0
        %v644 = vadd.f32 %v571, %v643
        %645 = vmatmul.f32.gmra.mxu0 %v589
        %v646 = vpop.f32.mrf.mxu0
        %v647 = vadd.f32 %v576, %v646
        %648 = vdwg.mxu0
        %649 = vmatpush.msra.mxu0 0.0
        %650 = vmatpush.msra.mxu0 0.0
        %651 = vmatpush.msra.mxu0 0.0
        %652 = vmatpush.msra.mxu0 0.0
        %653 = vmatpush.msra.mxu0 0.0
        %654 = vmatpush.msra.mxu0 0.0
        %655 = vmatpush.msra.mxu0 0.0
        %656 = vmatpush.msra.mxu0 0.0
        %657 = vmatpush.msra.mxu0 0.0
        %658 = vmatpush.msra.mxu0 0.0
        %659 = vmatpush.msra.mxu0 0.0
        %660 = vmatpush.msra.mxu0 0.0
        %661 = vmatpush.msra.mxu0 %v548
        %662 = vmatpush.msra.mxu0 %v544
        %663 = vmatpush.msra.mxu0 %v540
        %664 = vmatpush.msra.mxu0 %v536
        %665 = vmatmul.f32.gmra.mxu0 %v580
        %v666 = vpop.f32.mrf.mxu0
        %v667 = vadd.f32 %v561, %v666
        %668 = vmatmul.f32.gmra.mxu0 %v583
        %v669 = vpop.f32.mrf.mxu0
        %v670 = vadd.f32 %v566, %v669
        %671 = vmatmul.f32.gmra.mxu0 %v586
        %v672 = vpop.f32.mrf.mxu0
        %v673 = vadd.f32 %v571, %v672
        %674 = vmatmul.f32.gmra.mxu0 %v589
        %v675 = vpop.f32.mrf.mxu0
        %v676 = vadd.f32 %v576, %v675
        %677 = vdwg.mxu0
        %678 = vmatpush.msra.mxu0 0.0
        %679 = vmatpush.msra.mxu0 0.0
        %680 = vmatpush.msra.mxu0 0.0
        %681 = vmatpush.msra.mxu0 0.0
        %682 = vmatpush.msra.mxu0 0.0
        %683 = vmatpush.msra.mxu0 0.0
        %684 = vmatpush.msra.mxu0 0.0
        %685 = vmatpush.msra.mxu0 0.0
        %686 = vmatpush.msra.mxu0 0.0
        %687 = vmatpush.msra.mxu0 0.0
        %688 = vmatpush.msra.mxu0 0.0
        %689 = vmatpush.msra.mxu0 0.0
        %690 = vmatpush.msra.mxu0 %v549
        %691 = vmatpush.msra.mxu0 %v545
        %692 = vmatpush.msra.mxu0 %v541
        %693 = vmatpush.msra.mxu0 %v537
        %694 = vmatmul.f32.gmra.mxu0 %v580
        %v695 = vpop.f32.mrf.mxu0
        %v696 = vadd.f32 %v561, %v695
        %697 = vmatmul.f32.gmra.mxu0 %v583
        %v698 = vpop.f32.mrf.mxu0
        %v699 = vadd.f32 %v566, %v698
        %700 = vmatmul.f32.gmra.mxu0 %v586
        %v701 = vpop.f32.mrf.mxu0
        %v702 = vadd.f32 %v571, %v701
        %703 = vmatmul.f32.gmra.mxu0 %v589
        %v704 = vpop.f32.mrf.mxu0
        %v705 = vadd.f32 %v576, %v704
        %706 = vdwg.mxu0
        %v707 = vtanh.pop %v609
        %v708 = vtanh.pop %v638
        %v709 = vtanh.pop %v667
        %v710 = vtanh.pop %v696
        %v711 = vtanh.pop %v612
        %v712 = vtanh.pop %v641
        %v713 = vtanh.pop %v670
        %v714 = vtanh.pop %v699
        %v715 = vtanh.pop %v615
        %v716 = vtanh.pop %v644
        %v717 = vtanh.pop %v673
        %v718 = vtanh.pop %v702
        %v719 = vtanh.pop %v618
        %v720 = vtanh.pop %v647
        %v721 = vtanh.pop %v676
        %v722 = vtanh.pop %v705
        %v723 = vlaneseq
        %v724 = vshrl.u32 %v723, 7
        %v725 = vadd.s32 %v724, 8
        %v726 = vadd.s32 %v724, 16
        %v727 = vadd.s32 %v724, 24
        %vm728 = vcmp.eq.s32.totalorder %v724, 0
        %vm729 = vcmp.eq.s32.totalorder %v725, 0
        %vm730 = vcmp.eq.s32.totalorder %v726, 0
        %vm731 = vcmp.eq.s32.totalorder %v727, 0
        %v732 = vperm.slane %v361, 0
        %v733 = vperm.slane %v361, 2
        %v734 = vperm.slane %v361, 4
        %v735 = vperm.slane %v361, 6
        %v740 = vperm.slane %v732, 0
        %v741 = vperm.slane %v733, 0
        %v742 = vperm.slane %v734, 0
        %v743 = vperm.slane %v735, 0
        %v744 = vsel %vm728, %v740, 0.0
        %v745 = vsel %vm728, %v741, 0.0
        %v746 = vsel %vm728, %v742, 0.0
        %v747 = vsel %vm728, %v743, 0.0
        %v748 = vsel %vm729, %v740, 0.0
        %v749 = vsel %vm729, %v741, 0.0
        %v750 = vsel %vm729, %v742, 0.0
        %v751 = vsel %vm729, %v743, 0.0
        %v752 = vsel %vm730, %v740, 0.0
        %v753 = vsel %vm730, %v741, 0.0
        %v754 = vsel %vm730, %v742, 0.0
        %v755 = vsel %vm730, %v743, 0.0
        %v756 = vsel %vm731, %v740, 0.0
        %v757 = vsel %vm731, %v741, 0.0
        %v758 = vsel %vm731, %v742, 0.0
        %v759 = vsel %vm731, %v743, 0.0
        %vm760 = vcmp.eq.s32.totalorder %v724, 1
        %vm761 = vcmp.eq.s32.totalorder %v725, 1
        %vm762 = vcmp.eq.s32.totalorder %v726, 1
        %vm763 = vcmp.eq.s32.totalorder %v727, 1
        %v764 = vperm.slane %v361, 1
        %v765 = vperm.slane %v361, 3
        %v766 = vperm.slane %v361, 5
        %v767 = vperm.slane %v361, 7
        %v772 = vperm.slane %v764, 1
        %v773 = vperm.slane %v765, 1
        %v774 = vperm.slane %v766, 1
        %v775 = vperm.slane %v767, 1
        %v776 = vsel %vm760, %v772, 0.0
        %v777 = vsel %vm760, %v773, 0.0
        %v778 = vsel %vm760, %v774, 0.0
        %v779 = vsel %vm760, %v775, 0.0
        %v780 = vsel %vm761, %v772, 0.0
        %v781 = vsel %vm761, %v773, 0.0
        %v782 = vsel %vm761, %v774, 0.0
        %v783 = vsel %vm761, %v775, 0.0
        %v784 = vsel %vm762, %v772, 0.0
        %v785 = vsel %vm762, %v773, 0.0
        %v786 = vsel %vm762, %v774, 0.0
        %v787 = vsel %vm762, %v775, 0.0
        %v788 = vsel %vm763, %v772, 0.0
        %v789 = vsel %vm763, %v773, 0.0
        %v790 = vsel %vm763, %v774, 0.0
        %v791 = vsel %vm763, %v775, 0.0
        %v792 = vadd.f32 %v744, %v776
        %v793 = vadd.f32 %v745, %v777
        %v794 = vadd.f32 %v746, %v778
        %v795 = vadd.f32 %v747, %v779
        %v796 = vadd.f32 %v748, %v780
        %v797 = vadd.f32 %v749, %v781
        %v798 = vadd.f32 %v750, %v782
        %v799 = vadd.f32 %v751, %v783
        %v800 = vadd.f32 %v752, %v784
        %v801 = vadd.f32 %v753, %v785
        %v802 = vadd.f32 %v754, %v786
        %v803 = vadd.f32 %v755, %v787
        %v804 = vadd.f32 %v756, %v788
        %v805 = vadd.f32 %v757, %v789
        %v806 = vadd.f32 %v758, %v790
        %v807 = vadd.f32 %v759, %v791
        %v808 = vadd.f32 %v707, %v792
        %v809 = vadd.f32 %v708, %v793
        %v810 = vadd.f32 %v709, %v794
        %v811 = vadd.f32 %v710, %v795
        %v812 = vadd.f32 %v711, %v796
        %v813 = vadd.f32 %v712, %v797
        %v814 = vadd.f32 %v713, %v798
        %v815 = vadd.f32 %v714, %v799
        %v816 = vadd.f32 %v715, %v800
        %v817 = vadd.f32 %v716, %v801
        %v818 = vadd.f32 %v717, %v802
        %v819 = vadd.f32 %v718, %v803
        %v820 = vadd.f32 %v719, %v804
        %v821 = vadd.f32 %v720, %v805
        %v822 = vadd.f32 %v721, %v806
        %v823 = vadd.f32 %v722, %v807
        %v824 = vld [vmem:[%s5] sm:$0xff]
        %v825 = vld [vmem:[%s5 + $0x8] sm:$0xff]
        %v826 = vld [vmem:[%s5 + $0x10] sm:$0xff]
        %v827 = vld [vmem:[%s5 + $0x18] sm:$0xff]
        %v828 = vld [vmem:[%s6] sm:$0xff]
        %v829 = vld [vmem:[%s6 + $0x8] sm:$0xff]
        %v830 = vld [vmem:[%s6 + $0x10] sm:$0xff]
        %v831 = vld [vmem:[%s6 + $0x18] sm:$0xff]
        %833 = vset.pattern.permute.xlu0 0
        %834 = vperm.xlu0 %833, %v828
        %v835 = vpop.permute.xlu0 %834
        %838 = vset.pattern.permute.xlu0 0
        %839 = vperm.xlu0 %838, %v829
        %v840 = vpop.permute.xlu0 %839
        %843 = vset.pattern.permute.xlu0 0
        %844 = vperm.xlu0 %843, %v830
        %v845 = vpop.permute.xlu0 %844
        %848 = vset.pattern.permute.xlu0 0
        %849 = vperm.xlu0 %848, %v831
        %v850 = vpop.permute.xlu0 %849
        %v853 = vsel %vm578, %v824, 0
        %v856 = vsel %vm578, %v825, 0
        %v859 = vsel %vm578, %v826, 0
        %v862 = vsel %vm578, %v827, 0
        %864 = vmatpush.msra.mxu0 0.0
        %865 = vmatpush.msra.mxu0 0.0
        %866 = vmatpush.msra.mxu0 0.0
        %867 = vmatpush.msra.mxu0 0.0
        %868 = vmatpush.msra.mxu0 0.0
        %869 = vmatpush.msra.mxu0 0.0
        %870 = vmatpush.msra.mxu0 0.0
        %871 = vmatpush.msra.mxu0 0.0
        %872 = vmatpush.msra.mxu0 0.0
        %873 = vmatpush.msra.mxu0 0.0
        %874 = vmatpush.msra.mxu0 0.0
        %875 = vmatpush.msra.mxu0 0.0
        %876 = vmatpush.msra.mxu0 %v820
        %877 = vmatpush.msra.mxu0 %v816
        %878 = vmatpush.msra.mxu0 %v812
        %879 = vmatpush.msra.mxu0 %v808
        %880 = vmatmul.f32.gmra.mxu0 %v853
        %v881 = vpop.f32.mrf.mxu0
        %v882 = vadd.f32 %v835, %v881
        %883 = vmatmul.f32.gmra.mxu0 %v856
        %v884 = vpop.f32.mrf.mxu0
        %v885 = vadd.f32 %v840, %v884
        %886 = vmatmul.f32.gmra.mxu0 %v859
        %v887 = vpop.f32.mrf.mxu0
        %v888 = vadd.f32 %v845, %v887
        %889 = vmatmul.f32.gmra.mxu0 %v862
        %v890 = vpop.f32.mrf.mxu0
        %v891 = vadd.f32 %v850, %v890
        %892 = vdwg.mxu0
        %893 = vmatpush.msra.mxu0 0.0
        %894 = vmatpush.msra.mxu0 0.0
        %895 = vmatpush.msra.mxu0 0.0
        %896 = vmatpush.msra.mxu0 0.0
        %897 = vmatpush.msra.mxu0 0.0
        %898 = vmatpush.msra.mxu0 0.0
        %899 = vmatpush.msra.mxu0 0.0
        %900 = vmatpush.msra.mxu0 0.0
        %901 = vmatpush.msra.mxu0 0.0
        %902 = vmatpush.msra.mxu0 0.0
        %903 = vmatpush.msra.mxu0 0.0
        %904 = vmatpush.msra.mxu0 0.0
        %905 = vmatpush.msra.mxu0 %v821
        %906 = vmatpush.msra.mxu0 %v817
        %907 = vmatpush.msra.mxu0 %v813
        %908 = vmatpush.msra.mxu0 %v809
        %909 = vmatmul.f32.gmra.mxu0 %v853
        %v910 = vpop.f32.mrf.mxu0
        %v911 = vadd.f32 %v835, %v910
        %912 = vmatmul.f32.gmra.mxu0 %v856
        %v913 = vpop.f32.mrf.mxu0
        %v914 = vadd.f32 %v840, %v913
        %915 = vmatmul.f32.gmra.mxu0 %v859
        %v916 = vpop.f32.mrf.mxu0
        %v917 = vadd.f32 %v845, %v916
        %918 = vmatmul.f32.gmra.mxu0 %v862
        %v919 = vpop.f32.mrf.mxu0
        %v920 = vadd.f32 %v850, %v919
        %921 = vdwg.mxu0
        %922 = vmatpush.msra.mxu0 0.0
        %923 = vmatpush.msra.mxu0 0.0
        %924 = vmatpush.msra.mxu0 0.0
        %925 = vmatpush.msra.mxu0 0.0
        %926 = vmatpush.msra.mxu0 0.0
        %927 = vmatpush.msra.mxu0 0.0
        %928 = vmatpush.msra.mxu0 0.0
        %929 = vmatpush.msra.mxu0 0.0
        %930 = vmatpush.msra.mxu0 0.0
        %931 = vmatpush.msra.mxu0 0.0
        %932 = vmatpush.msra.mxu0 0.0
        %933 = vmatpush.msra.mxu0 0.0
        %934 = vmatpush.msra.mxu0 %v822
        %935 = vmatpush.msra.mxu0 %v818
        %936 = vmatpush.msra.mxu0 %v814
        %937 = vmatpush.msra.mxu0 %v810
        %938 = vmatmul.f32.gmra.mxu0 %v853
        %v939 = vpop.f32.mrf.mxu0
        %v940 = vadd.f32 %v835, %v939
        %941 = vmatmul.f32.gmra.mxu0 %v856
        %v942 = vpop.f32.mrf.mxu0
        %v943 = vadd.f32 %v840, %v942
        %944 = vmatmul.f32.gmra.mxu0 %v859
        %v945 = vpop.f32.mrf.mxu0
        %v946 = vadd.f32 %v845, %v945
        %947 = vmatmul.f32.gmra.mxu0 %v862
        %v948 = vpop.f32.mrf.mxu0
        %v949 = vadd.f32 %v850, %v948
        %950 = vdwg.mxu0
        %951 = vmatpush.msra.mxu0 0.0
        %952 = vmatpush.msra.mxu0 0.0
        %953 = vmatpush.msra.mxu0 0.0
        %954 = vmatpush.msra.mxu0 0.0
        %955 = vmatpush.msra.mxu0 0.0
        %956 = vmatpush.msra.mxu0 0.0
        %957 = vmatpush.msra.mxu0 0.0
        %958 = vmatpush.msra.mxu0 0.0
        %959 = vmatpush.msra.mxu0 0.0
        %960 = vmatpush.msra.mxu0 0.0
        %961 = vmatpush.msra.mxu0 0.0
        %962 = vmatpush.msra.mxu0 0.0
        %963 = vmatpush.msra.mxu0 %v823
        %964 = vmatpush.msra.mxu0 %v819
        %965 = vmatpush.msra.mxu0 %v815
        %966 = vmatpush.msra.mxu0 %v811
        %967 = vmatmul.f32.gmra.mxu0 %v853
        %v968 = vpop.f32.mrf.mxu0
        %v969 = vadd.f32 %v835, %v968
        %970 = vmatmul.f32.gmra.mxu0 %v856
        %v971 = vpop.f32.mrf.mxu0
        %v972 = vadd.f32 %v840, %v971
        %973 = vmatmul.f32.gmra.mxu0 %v859
        %v974 = vpop.f32.mrf.mxu0
        %v975 = vadd.f32 %v845, %v974
        %976 = vmatmul.f32.gmra.mxu0 %v862
        %v977 = vpop.f32.mrf.mxu0
        %v978 = vadd.f32 %v850, %v977
        %979 = vdwg.mxu0
        %v980 = vtanh.pop %v882
        %v981 = vtanh.pop %v911
        %v982 = vtanh.pop %v940
        %v983 = vtanh.pop %v969
        %v984 = vtanh.pop %v885
        %v985 = vtanh.pop %v914
        %v986 = vtanh.pop %v943
        %v987 = vtanh.pop %v972
        %v988 = vtanh.pop %v888
        %v989 = vtanh.pop %v917
        %v990 = vtanh.pop %v946
        %v991 = vtanh.pop %v975
        %v992 = vtanh.pop %v891
        %v993 = vtanh.pop %v920
        %v994 = vtanh.pop %v949
        %v995 = vtanh.pop %v978
        %v996 = vld [vmem:[%s7] sm:$0xff]
        %v997 = vld [vmem:[%s7 + $0x8] sm:$0xff]
        %v998 = vld [vmem:[%s7 + $0x10] sm:$0xff]
        %v999 = vld [vmem:[%s7 + $0x18] sm:$0xff]
        %v1000 = vld [vmem:[%s8] sm:$0xff]
        %v1001 = vld [vmem:[%s8 + $0x8] sm:$0xff]
        %v1002 = vld [vmem:[%s8 + $0x10] sm:$0xff]
        %v1003 = vld [vmem:[%s8 + $0x18] sm:$0xff]
        %1005 = vset.pattern.permute.xlu0 0
        %1006 = vperm.xlu0 %1005, %v1000
        %v1007 = vpop.permute.xlu0 %1006
        %1010 = vset.pattern.permute.xlu0 0
        %1011 = vperm.xlu0 %1010, %v1001
        %v1012 = vpop.permute.xlu0 %1011
        %1015 = vset.pattern.permute.xlu0 0
        %1016 = vperm.xlu0 %1015, %v1002
        %v1017 = vpop.permute.xlu0 %1016
        %1020 = vset.pattern.permute.xlu0 0
        %1021 = vperm.xlu0 %1020, %v1003
        %v1022 = vpop.permute.xlu0 %1021
        %v1025 = vsel %vm578, %v996, 0
        %v1028 = vsel %vm578, %v997, 0
        %v1031 = vsel %vm578, %v998, 0
        %v1034 = vsel %vm578, %v999, 0
        %1036 = vmatpush.msra.mxu0 0.0
        %1037 = vmatpush.msra.mxu0 0.0
        %1038 = vmatpush.msra.mxu0 0.0
        %1039 = vmatpush.msra.mxu0 0.0
        %1040 = vmatpush.msra.mxu0 0.0
        %1041 = vmatpush.msra.mxu0 0.0
        %1042 = vmatpush.msra.mxu0 0.0
        %1043 = vmatpush.msra.mxu0 0.0
        %1044 = vmatpush.msra.mxu0 0.0
        %1045 = vmatpush.msra.mxu0 0.0
        %1046 = vmatpush.msra.mxu0 0.0
        %1047 = vmatpush.msra.mxu0 0.0
        %1048 = vmatpush.msra.mxu0 %v992
        %1049 = vmatpush.msra.mxu0 %v988
        %1050 = vmatpush.msra.mxu0 %v984
        %1051 = vmatpush.msra.mxu0 %v980
        %1052 = vmatmul.f32.gmra.mxu0 %v1025
        %v1053 = vpop.f32.mrf.mxu0
        %v1054 = vadd.f32 %v1007, %v1053
        %1055 = vmatmul.f32.gmra.mxu0 %v1028
        %v1056 = vpop.f32.mrf.mxu0
        %v1057 = vadd.f32 %v1012, %v1056
        %1058 = vmatmul.f32.gmra.mxu0 %v1031
        %v1059 = vpop.f32.mrf.mxu0
        %v1060 = vadd.f32 %v1017, %v1059
        %1061 = vmatmul.f32.gmra.mxu0 %v1034
        %v1062 = vpop.f32.mrf.mxu0
        %v1063 = vadd.f32 %v1022, %v1062
        %1064 = vdwg.mxu0
        %1065 = vmatpush.msra.mxu0 0.0
        %1066 = vmatpush.msra.mxu0 0.0
        %1067 = vmatpush.msra.mxu0 0.0
        %1068 = vmatpush.msra.mxu0 0.0
        %1069 = vmatpush.msra.mxu0 0.0
        %1070 = vmatpush.msra.mxu0 0.0
        %1071 = vmatpush.msra.mxu0 0.0
        %1072 = vmatpush.msra.mxu0 0.0
        %1073 = vmatpush.msra.mxu0 0.0
        %1074 = vmatpush.msra.mxu0 0.0
        %1075 = vmatpush.msra.mxu0 0.0
        %1076 = vmatpush.msra.mxu0 0.0
        %1077 = vmatpush.msra.mxu0 %v993
        %1078 = vmatpush.msra.mxu0 %v989
        %1079 = vmatpush.msra.mxu0 %v985
        %1080 = vmatpush.msra.mxu0 %v981
        %1081 = vmatmul.f32.gmra.mxu0 %v1025
        %v1082 = vpop.f32.mrf.mxu0
        %v1083 = vadd.f32 %v1007, %v1082
        %1084 = vmatmul.f32.gmra.mxu0 %v1028
        %v1085 = vpop.f32.mrf.mxu0
        %v1086 = vadd.f32 %v1012, %v1085
        %1087 = vmatmul.f32.gmra.mxu0 %v1031
        %v1088 = vpop.f32.mrf.mxu0
        %v1089 = vadd.f32 %v1017, %v1088
        %1090 = vmatmul.f32.gmra.mxu0 %v1034
        %v1091 = vpop.f32.mrf.mxu0
        %v1092 = vadd.f32 %v1022, %v1091
        %1093 = vdwg.mxu0
        %1094 = vmatpush.msra.mxu0 0.0
        %1095 = vmatpush.msra.mxu0 0.0
        %1096 = vmatpush.msra.mxu0 0.0
        %1097 = vmatpush.msra.mxu0 0.0
        %1098 = vmatpush.msra.mxu0 0.0
        %1099 = vmatpush.msra.mxu0 0.0
        %1100 = vmatpush.msra.mxu0 0.0
        %1101 = vmatpush.msra.mxu0 0.0
        %1102 = vmatpush.msra.mxu0 0.0
        %1103 = vmatpush.msra.mxu0 0.0
        %1104 = vmatpush.msra.mxu0 0.0
        %1105 = vmatpush.msra.mxu0 0.0
        %1106 = vmatpush.msra.mxu0 %v994
        %1107 = vmatpush.msra.mxu0 %v990
        %1108 = vmatpush.msra.mxu0 %v986
        %1109 = vmatpush.msra.mxu0 %v982
        %1110 = vmatmul.f32.gmra.mxu0 %v1025
        %v1111 = vpop.f32.mrf.mxu0
        %v1112 = vadd.f32 %v1007, %v1111
        %1113 = vmatmul.f32.gmra.mxu0 %v1028
        %v1114 = vpop.f32.mrf.mxu0
        %v1115 = vadd.f32 %v1012, %v1114
        %1116 = vmatmul.f32.gmra.mxu0 %v1031
        %v1117 = vpop.f32.mrf.mxu0
        %v1118 = vadd.f32 %v1017, %v1117
        %1119 = vmatmul.f32.gmra.mxu0 %v1034
        %v1120 = vpop.f32.mrf.mxu0
        %v1121 = vadd.f32 %v1022, %v1120
        %1122 = vdwg.mxu0
        %1123 = vmatpush.msra.mxu0 0.0
        %1124 = vmatpush.msra.mxu0 0.0
        %1125 = vmatpush.msra.mxu0 0.0
        %1126 = vmatpush.msra.mxu0 0.0
        %1127 = vmatpush.msra.mxu0 0.0
        %1128 = vmatpush.msra.mxu0 0.0
        %1129 = vmatpush.msra.mxu0 0.0
        %1130 = vmatpush.msra.mxu0 0.0
        %1131 = vmatpush.msra.mxu0 0.0
        %1132 = vmatpush.msra.mxu0 0.0
        %1133 = vmatpush.msra.mxu0 0.0
        %1134 = vmatpush.msra.mxu0 0.0
        %1135 = vmatpush.msra.mxu0 %v995
        %1136 = vmatpush.msra.mxu0 %v991
        %1137 = vmatpush.msra.mxu0 %v987
        %1138 = vmatpush.msra.mxu0 %v983
        %1139 = vmatmul.f32.gmra.mxu0 %v1025
        %v1140 = vpop.f32.mrf.mxu0
        %v1141 = vadd.f32 %v1007, %v1140
        %1142 = vmatmul.f32.gmra.mxu0 %v1028
        %v1143 = vpop.f32.mrf.mxu0
        %v1144 = vadd.f32 %v1012, %v1143
        %1145 = vmatmul.f32.gmra.mxu0 %v1031
        %v1146 = vpop.f32.mrf.mxu0
        %v1147 = vadd.f32 %v1017, %v1146
        %1148 = vmatmul.f32.gmra.mxu0 %v1034
        %v1149 = vpop.f32.mrf.mxu0
        %v1150 = vadd.f32 %v1022, %v1149
        %1151 = vdwg.mxu0
        %v1152 = vtanh.pop %v1054
        %v1153 = vtanh.pop %v1083
        %v1154 = vtanh.pop %v1112
        %v1155 = vtanh.pop %v1141
        %v1156 = vtanh.pop %v1057
        %v1157 = vtanh.pop %v1086
        %v1158 = vtanh.pop %v1115
        %v1159 = vtanh.pop %v1144
        %v1160 = vtanh.pop %v1060
        %v1161 = vtanh.pop %v1089
        %v1162 = vtanh.pop %v1118
        %v1163 = vtanh.pop %v1147
        %v1164 = vtanh.pop %v1063
        %v1165 = vtanh.pop %v1092
        %v1166 = vtanh.pop %v1121
        %v1167 = vtanh.pop %v1150
        %v1168 = vadd.f32 %v1152, %v808
        %v1169 = vadd.f32 %v1153, %v809
        %v1170 = vadd.f32 %v1154, %v810
        %v1171 = vadd.f32 %v1155, %v811
        %v1172 = vadd.f32 %v1156, %v812
        %v1173 = vadd.f32 %v1157, %v813
        %v1174 = vadd.f32 %v1158, %v814
        %v1175 = vadd.f32 %v1159, %v815
        %v1176 = vadd.f32 %v1160, %v816
        %v1177 = vadd.f32 %v1161, %v817
        %v1178 = vadd.f32 %v1162, %v818
        %v1179 = vadd.f32 %v1163, %v819
        %v1180 = vadd.f32 %v1164, %v820
        %v1181 = vadd.f32 %v1165, %v821
        %v1182 = vadd.f32 %v1166, %v822
        %v1183 = vadd.f32 %v1167, %v823
        %v1184 = vld [vmem:[%s9] sm:$0x1]
        %v1186 = vsel %vm578, %v1184, 0
        %1188 = vmatpush.msra.mxu0 0.0
        %1189 = vmatpush.msra.mxu0 0.0
        %1190 = vmatpush.msra.mxu0 0.0
        %1191 = vmatpush.msra.mxu0 0.0
        %1192 = vmatpush.msra.mxu0 0.0
        %1193 = vmatpush.msra.mxu0 0.0
        %1194 = vmatpush.msra.mxu0 0.0
        %1195 = vmatpush.msra.mxu0 0.0
        %1196 = vmatpush.msra.mxu0 0.0
        %1197 = vmatpush.msra.mxu0 0.0
        %1198 = vmatpush.msra.mxu0 0.0
        %1199 = vmatpush.msra.mxu0 0.0
        %1200 = vmatpush.msra.mxu0 %v1180
        %1201 = vmatpush.msra.mxu0 %v1176
        %1202 = vmatpush.msra.mxu0 %v1172
        %1203 = vmatpush.msra.mxu0 %v1168
        %1204 = vmatmul.f32.gmra.mxu0 %v1186
        %v1205 = vpop.f32.mrf.mxu0
        %v1206 = vadd.f32 0.0, %v1205
        %1207 = vdwg.mxu0
        %1208 = vmatpush.msra.mxu0 0.0
        %1209 = vmatpush.msra.mxu0 0.0
        %1210 = vmatpush.msra.mxu0 0.0
        %1211 = vmatpush.msra.mxu0 0.0
        %1212 = vmatpush.msra.mxu0 0.0
        %1213 = vmatpush.msra.mxu0 0.0
        %1214 = vmatpush.msra.mxu0 0.0
        %1215 = vmatpush.msra.mxu0 0.0
        %1216 = vmatpush.msra.mxu0 0.0
        %1217 = vmatpush.msra.mxu0 0.0
        %1218 = vmatpush.msra.mxu0 0.0
        %1219 = vmatpush.msra.mxu0 0.0
        %1220 = vmatpush.msra.mxu0 %v1181
        %1221 = vmatpush.msra.mxu0 %v1177
        %1222 = vmatpush.msra.mxu0 %v1173
        %1223 = vmatpush.msra.mxu0 %v1169
        %1224 = vmatmul.f32.gmra.mxu0 %v1186
        %v1225 = vpop.f32.mrf.mxu0
        %v1226 = vadd.f32 0.0, %v1225
        %1227 = vdwg.mxu0
        %1228 = vmatpush.msra.mxu0 0.0
        %1229 = vmatpush.msra.mxu0 0.0
        %1230 = vmatpush.msra.mxu0 0.0
        %1231 = vmatpush.msra.mxu0 0.0
        %1232 = vmatpush.msra.mxu0 0.0
        %1233 = vmatpush.msra.mxu0 0.0
        %1234 = vmatpush.msra.mxu0 0.0
        %1235 = vmatpush.msra.mxu0 0.0
        %1236 = vmatpush.msra.mxu0 0.0
        %1237 = vmatpush.msra.mxu0 0.0
        %1238 = vmatpush.msra.mxu0 0.0
        %1239 = vmatpush.msra.mxu0 0.0
        %1240 = vmatpush.msra.mxu0 %v1182
        %1241 = vmatpush.msra.mxu0 %v1178
        %1242 = vmatpush.msra.mxu0 %v1174
        %1243 = vmatpush.msra.mxu0 %v1170
        %1244 = vmatmul.f32.gmra.mxu0 %v1186
        %v1245 = vpop.f32.mrf.mxu0
        %v1246 = vadd.f32 0.0, %v1245
        %1247 = vdwg.mxu0
        %1248 = vmatpush.msra.mxu0 0.0
        %1249 = vmatpush.msra.mxu0 0.0
        %1250 = vmatpush.msra.mxu0 0.0
        %1251 = vmatpush.msra.mxu0 0.0
        %1252 = vmatpush.msra.mxu0 0.0
        %1253 = vmatpush.msra.mxu0 0.0
        %1254 = vmatpush.msra.mxu0 0.0
        %1255 = vmatpush.msra.mxu0 0.0
        %1256 = vmatpush.msra.mxu0 0.0
        %1257 = vmatpush.msra.mxu0 0.0
        %1258 = vmatpush.msra.mxu0 0.0
        %1259 = vmatpush.msra.mxu0 0.0
        %1260 = vmatpush.msra.mxu0 %v1183
        %1261 = vmatpush.msra.mxu0 %v1179
        %1262 = vmatpush.msra.mxu0 %v1175
        %1263 = vmatpush.msra.mxu0 %v1171
        %1264 = vmatmul.f32.gmra.mxu0 %v1186
        %v1265 = vpop.f32.mrf.mxu0
        %v1266 = vadd.f32 0.0, %v1265
        %1267 = vdwg.mxu0
        %v1272 = vrot.slane %v1226, 7
        %v1273 = vrot.slane %v1246, 6
        %v1274 = vrot.slane %v1266, 5
        %vm1275 = vcmask 1040384
        %v1276 = vsel %vm1275, %v1206, %v1272
        %vm1277 = vcmask 1042434
        %v1278 = vsel %vm1277, %v1273, %v1274
        %v1279 = vsel %vm409, %v1276, %v1278
        %v1281 = vlaneseq
        %vm1282 = vcmp.ge.s32.totalorder %v1281, 0
        %vm1283 = vcmp.lt.s32.totalorder %v1281, 512
        %vm1284 = vmand %vm1282, %vm1283
        %1285 = vst.msk [vmem:[%s353] sm:$0xf] %vm1284, %v1279
        %s1286 = sand.u32 %s247, 1
        %s1287 = scalar_lea.sflag [#allocation3], %s1286
        %s1288 = sand.u32 %s247, 1
        %s1289 = smul.addr %s1288, 4
        %s1290 = scalar_lea.vmem [#allocation2], %s1289
        // Predicated region
        $region61: #{tpu_custom_call.1} parent=59 // pred_check
          %p1291 = pneg %p257
        $region62: #{tpu_custom_call.1} parent=59 // pred_check_branch
          %1293 = sbr.rel (%p1291) target = $region64
        $region63: #{tpu_custom_call.1} parent=59 // pred_region
          %s1294 = smul.u32 4, %s24
          %1296 = vsyncadd %s1287, 0
          %s1297 = scalar_lea.hbm %s10, %s1294
          %s1299 = sshll.u32 %s1290, 4
          %s1300 = int_to_ptr.vmem [resolvable:$true] %s1299
          %s1301 = sshll.u32 %s1297, 4
          %s1302 = int_to_ptr.hbm [resolvable:$true] %s1301
          %1304 = dma.vmem_to_hbm [thread:$0]  %s1300, 64, %s1302, %s1287
        $region64: #{tpu_custom_call.1} parent=59 // pred_fallthru
          _
      $region60: #{tpu_custom_call.1} parent=5 // pred_fallthru
        _
      %p1305 = scmp.le.s32.totalorder 2, %s19
      // Predicated region
      $region65: #{tpu_custom_call.1} parent=5 // pred_check
        %p1306 = pneg %p1305
      $region66: #{tpu_custom_call.1} parent=5 // pred_check_branch
        %1308 = sbr.rel (%p1306) target = $region68
      $region67: #{tpu_custom_call.1} parent=5 // pred_region
        %s1309 = ssub.s32 %s19, 2
        // Predicated region
        $region69: #{tpu_custom_call.1} parent=67 // pred_check
          %p1310 = pneg %p263
        $region70: #{tpu_custom_call.1} parent=67 // pred_check_branch
          %1312 = sbr.rel (%p1310) target = $region72
        $region71: #{tpu_custom_call.1} parent=67 // pred_region
          %s1313 = sand.u32 %s248, 1
          %s1314 = scalar_lea.sflag [#allocation3], %s1313
          %s1315 = sand.u32 %s248, 1
          %s1316 = smul.addr %s1315, 4
          %s1317 = scalar_lea.vmem [#allocation2], %s1316
          %1319 = dma.done %s1314, 64
        $region72: #{tpu_custom_call.1} parent=67 // pred_fallthru
          _
      $region68: #{tpu_custom_call.1} parent=5 // pred_fallthru
        _
    $region6: #{tpu_custom_call.1} parent=1 // loop_footer
      %s23 = sadd.s32 1, %s19
    $region7: #{tpu_custom_call.1} parent=1 // loop_footer_branch
      %18 = sbr.rel target = $region3
    $region8: #{tpu_custom_call.1} parent=1 // loop_exit
      _
    %1320 = vsyncpa [#allocation3], 1
    %s1321 = scalar_lea.sflag [#allocation3], 1
    %1322 = vsyncpa %s1321, 1

</llo_original>
